<compile_context>
chip_gen: v7x
topology: tpu7x:2x2x1
jax: 0.10.0
libtpu: 0.0.40
codegen_flags: <defaults>
</compile_context>

<pallas_src>
import functools

import jax
import jax.numpy as jnp
from jax import lax
from jax.experimental import pallas as pl
from jax.experimental.pallas import tpu as pltpu

_EPS = 1e-5
_NEG_SLOPE = 0.2


def _linear_unit_kernel(x_ref, w_ref, b_ref, g_ref, beta_ref, o_ref, stats_ref,
                        *, b_real, b_tile, need_row_mask):
    phase = pl.program_id(1)   # 0: accumulate batch stats, 1: normalize+activate
    bidx = pl.program_id(2)    # batch-tile index

    # Linear: x @ W^T on the MXU; W stays in PyTorch (Fout, Fin) layout and we
    # contract dim 1 of both operands, so no transpose is ever materialized.
    y = lax.dot_general(
        x_ref[...], w_ref[...],
        dimension_numbers=(((1,), (1,)), ((), ())),
        preferred_element_type=jnp.float32,
    ) + b_ref[...]

    # ---- phase 0: accumulate per-column sum / sum-of-squares ----------------
    @pl.when((phase == 0) & (bidx == 0))
    def _init():
        stats_ref[...] = jnp.zeros_like(stats_ref)

    @pl.when(phase == 0)
    def _accumulate():
        if need_row_mask:
            row = bidx * b_tile + lax.broadcasted_iota(jnp.int32, y.shape, 0)
            yv = jnp.where(row < b_real, y, jnp.float32(0.0))
        else:
            yv = y
        stats_ref[0:1, :] += jnp.sum(yv, axis=0, keepdims=True)
        stats_ref[1:2, :] += jnp.sum(yv * yv, axis=0, keepdims=True)

    # ---- phase 1: fold BN into (scale, shift) once, then FMA + LeakyReLU ----
    @pl.when((phase == 1) & (bidx == 0))
    def _fold():
        inv_n = jnp.float32(1.0 / b_real)
        mean = stats_ref[0:1, :] * inv_n
        # E[y^2]-E[y]^2 can cancel for very large activations; accumulators are
        # f32 and clamped at 0.  TODO(synk): switch to Welford if needed.
        var = jnp.maximum(stats_ref[1:2, :] * inv_n - mean * mean, 0.0)
        scale = g_ref[...] * lax.rsqrt(var + jnp.float32(_EPS))
        shift = beta_ref[...] - mean * scale
        stats_ref[0:1, :] = scale
        stats_ref[1:2, :] = shift

    @pl.when(phase == 1)
    def _emit():
        y_bn = y * stats_ref[0:1, :] + stats_ref[1:2, :]
        o_ref[...] = jnp.where(
            y_bn >= 0, y_bn, jnp.float32(_NEG_SLOPE) * y_bn
        ).astype(o_ref.dtype)


def linear_unit(x, weight, bias, gamma, beta, *, b_tile=128, fout_tile=512):
    """Fused Linear + BatchNorm1d(train) + LeakyReLU(0.2).

    x: (B, Fin) f32; weight: (Fout, Fin) (PyTorch nn.Linear layout);
    bias/gamma/beta: (Fout,).  Returns (B, Fout) f32.
    """
    B, Fin = x.shape
    Fout, Fin_w = weight.shape
    assert Fin_w == Fin

    LANE, SUB = 128, 8
    # Lane-dense output: pad Fout to a multiple of 128 (and of the Fout tile).
    fout_pad = -(-Fout // LANE) * LANE
    f_tile = min(fout_tile, fout_pad)
    fout_pad = -(-fout_pad // f_tile) * f_tile
    # Sublane-align the batch and round up to the batch tile.
    b_pad = -(-B // SUB) * SUB
    bt = min(b_tile, b_pad)
    b_pad = -(-b_pad // bt) * bt

    if b_pad != B:
        x = jnp.pad(x, ((0, b_pad - B), (0, 0)))
    if fout_pad != Fout:
        # Zero-padded output columns: exactly 0 at the output, and per-column BN
        # means they never perturb the real columns' statistics.
        weight = jnp.pad(weight, ((0, fout_pad - Fout), (0, 0)))
        bias = jnp.pad(bias, (0, fout_pad - Fout))
        gamma = jnp.pad(gamma, (0, fout_pad - Fout))
        beta = jnp.pad(beta, (0, fout_pad - Fout))
    bias2 = bias.reshape(1, fout_pad)
    gamma2 = gamma.reshape(1, fout_pad)
    beta2 = beta.reshape(1, fout_pad)

    nb = b_pad // bt
    nf = fout_pad // f_tile
    grid = (nf, 2, nb)   # (Fout tiles, {stats, normalize}, batch tiles)

    kernel = functools.partial(
        _linear_unit_kernel, b_real=B, b_tile=bt, need_row_mask=(b_pad != B))

    # VMEM budget: double-buffered input/output tiles + stats scratch (bytes).
    vmem_est = 4 * (2 * bt * Fin + 2 * f_tile * Fin + 3 * 2 * f_tile
                    + 2 * bt * f_tile + 2 * f_tile)
    vmem_limit = int(min(max(4 * vmem_est, 16 * 2**20), 48 * 2**20))

    cost = pl.CostEstimate(
        flops=2 * (2 * b_pad * Fin * fout_pad),     # matmul runs in both phases
        transcendentals=fout_pad,                   # rsqrt per output column
        bytes_accessed=4 * (2 * b_pad * Fin + 2 * fout_pad * Fin
                            + 3 * fout_pad + 2 * b_pad * fout_pad),
    )

    out = pl.pallas_call(
        kernel,
        out_shape=jax.ShapeDtypeStruct((b_pad, fout_pad), jnp.float32),
        grid_spec=pltpu.PrefetchScalarGridSpec(
            num_scalar_prefetch=0,
            grid=grid,
            in_specs=[
                pl.BlockSpec((bt, Fin), lambda f, p, b: (b, 0)),        # x
                pl.BlockSpec((f_tile, Fin), lambda f, p, b: (f, 0)),    # W (Fout, Fin)
                pl.BlockSpec((1, f_tile), lambda f, p, b: (0, f)),      # bias
                pl.BlockSpec((1, f_tile), lambda f, p, b: (0, f)),      # gamma
                pl.BlockSpec((1, f_tile), lambda f, p, b: (0, f)),      # beta
            ],
            out_specs=pl.BlockSpec((bt, f_tile), lambda f, p, b: (b, f)),
            scratch_shapes=[pltpu.VMEM((2, f_tile), jnp.float32)],
        ),
        compiler_params=pltpu.CompilerParams(
            dimension_semantics=("parallel", "arbitrary", "arbitrary"),
            vmem_limit_bytes=vmem_limit,
        ),
        cost_estimate=cost,
    )(x, weight, bias2, gamma2, beta2)

    if (b_pad, fout_pad) != (B, Fout):
        out = out[:B, :Fout]
    return out


def reference(x, weight, bias, gamma, beta):
    y = x @ weight.T + bias
    mean = jnp.mean(y, axis=0, keepdims=True)
    var = jnp.mean((y - mean) ** 2, axis=0, keepdims=True)
    y = (y - mean) / jnp.sqrt(var + _EPS) * gamma + beta
    return jnp.where(y >= 0, y, _NEG_SLOPE * y)


if __name__ == "__main__":
    key = jax.random.PRNGKey(0)
    B, in_features, out_features = 8, 32, 32

    k_x, k_w, k_b = jax.random.split(key, 3)
    x = jax.random.normal(k_x, (B, in_features), dtype=jnp.float32)

    # PyTorch-style Linear init: U(-1/sqrt(Fin), 1/sqrt(Fin)).
    bound = 1.0 / jnp.sqrt(jnp.float32(in_features))
    weight = jax.random.uniform(
        k_w, (out_features, in_features), minval=-bound, maxval=bound,
        dtype=jnp.float32)
    bias = jax.random.uniform(
        k_b, (out_features,), minval=-bound, maxval=bound, dtype=jnp.float32)
    # BatchNorm1d affine params at init: gamma=1, beta=0.
    gamma = jnp.ones((out_features,), dtype=jnp.float32)
    beta = jnp.zeros((out_features,), dtype=jnp.float32)

    out = jax.block_until_ready(linear_unit(x, weight, bias, gamma, beta))
    ref = jax.block_until_ready(reference(x, weight, bias, gamma, beta))

    assert out.shape == (B, out_features)
    assert jnp.allclose(out, ref, atol=1e-4, rtol=1e-4), "mismatch vs reference"
    print("KERNEL_OK")
</pallas_src>

<mosaic_0001>
module attributes {stable_mosaic.version = 11 : i64} {
  func.func @_linear_unit_kernel(%arg0: i32, %arg1: i32, %arg2: i32, %arg3: memref<8x32xf32, #tpu.memory_space<vmem>>, %arg4: memref<128x32xf32, #tpu.memory_space<vmem>>, %arg5: memref<1x128xf32, #tpu.memory_space<vmem>>, %arg6: memref<1x128xf32, #tpu.memory_space<vmem>>, %arg7: memref<1x128xf32, #tpu.memory_space<vmem>>, %arg8: memref<8x128xf32, #tpu.memory_space<vmem>>, %arg9: memref<2x128xf32, #tpu.memory_space<vmem>>) attributes {dimension_semantics = [#tpu.dimension_semantics<parallel>, #tpu.dimension_semantics<arbitrary>, #tpu.dimension_semantics<arbitrary>], iteration_bounds = array<i64: 1, 2, 1>, scalar_prefetch = 0 : i64, scratch_operands = 1 : i64, tpu.core_type = #tpu.core_type<tc>, window_params = [{transform_indices = @transform_0, window_bounds = array<i64: 8, 32>}, {transform_indices = @transform_1, window_bounds = array<i64: 128, 32>}, {transform_indices = @transform_2, window_bounds = array<i64: 1, 128>}, {transform_indices = @transform_3, window_bounds = array<i64: 1, 128>}, {transform_indices = @transform_4, window_bounds = array<i64: 1, 128>}, {transform_indices = @transform_5, window_bounds = array<i64: 8, 128>}]} {
    %c0 = arith.constant 0 : index
    %c0_0 = arith.constant 0 : index
    %0 = vector.load %arg3[%c0, %c0_0] : memref<8x32xf32, #tpu.memory_space<vmem>>, vector<8x32xf32>
    %c0_1 = arith.constant 0 : index
    %c0_2 = arith.constant 0 : index
    %1 = vector.load %arg4[%c0_1, %c0_2] : memref<128x32xf32, #tpu.memory_space<vmem>>, vector<128x32xf32>
    %cst = arith.constant dense<0.000000e+00> : vector<8x128xf32>
    %2 = tpu.matmul %0, %1, %cst {dimension_numbers = #tpu.dot_dimension_numbers<[1], [1], [0], [0], [0, 0, 1, 0], [], []>} : vector<8x32xf32>, vector<128x32xf32>, vector<8x128xf32> -> vector<8x128xf32>
    %c0_3 = arith.constant 0 : index
    %c0_4 = arith.constant 0 : index
    %3 = vector.load %arg5[%c0_3, %c0_4] : memref<1x128xf32, #tpu.memory_space<vmem>>, vector<1x128xf32>
    %4 = vector.broadcast %3 : vector<1x128xf32> to vector<8x128xf32>
    %5 = arith.addf %2, %4 : vector<8x128xf32>
    %c0_i32 = arith.constant 0 : i32
    %6 = arith.cmpi eq, %arg1, %c0_i32 : i32
    %c0_i32_5 = arith.constant 0 : i32
    %7 = arith.cmpi eq, %arg2, %c0_i32_5 : i32
    %8 = arith.andi %6, %7 : i1
    %9 = arith.extui %8 : i1 to i32
    %c0_i32_6 = arith.constant 0 : i32
    %10 = arith.cmpi ne, %9, %c0_i32_6 : i32
    scf.if %10 {
      %cst_13 = arith.constant 0.000000e+00 : f32
      %22 = vector.broadcast %cst_13 : f32 to vector<2x128xf32>
      %c0_14 = arith.constant 0 : index
      %c0_15 = arith.constant 0 : index
      %23 = vector.load %arg9[%c0_14, %c0_15] : memref<2x128xf32, #tpu.memory_space<vmem>>, vector<2x128xf32>
      tpu.vector_store %arg9[%c0_14, %c0_15], %22 {strides = array<i32>} : memref<2x128xf32, #tpu.memory_space<vmem>>, vector<2x128xf32>,
    } else {
    }
    %c0_i32_7 = arith.constant 0 : i32
    %11 = arith.cmpi eq, %arg1, %c0_i32_7 : i32
    %12 = arith.extui %11 : i1 to i32
    %c0_i32_8 = arith.constant 0 : i32
    %13 = arith.cmpi ne, %12, %c0_i32_8 : i32
    scf.if %13 {
      %c0_13 = arith.constant 0 : index
      %c0_14 = arith.constant 0 : index
      %22 = vector.load %arg9[%c0_13, %c0_14] : memref<2x128xf32, #tpu.memory_space<vmem>>, vector<1x128xf32>
      %cst_15 = arith.constant dense<0.000000e+00> : vector<128xf32>
      %23 = vector.multi_reduction <add>, %5, %cst_15 [0] : vector<8x128xf32> to vector<128xf32>
      %24 = vector.shape_cast %23 : vector<128xf32> to vector<1x128xf32>
      %25 = arith.addf %22, %24 : vector<1x128xf32>
      %c0_16 = arith.constant 0 : index
      %c0_17 = arith.constant 0 : index
      %26 = vector.load %arg9[%c0_16, %c0_17] : memref<2x128xf32, #tpu.memory_space<vmem>>, vector<1x128xf32>
      tpu.vector_store %arg9[%c0_16, %c0_17], %25 {strides = array<i32>} : memref<2x128xf32, #tpu.memory_space<vmem>>, vector<1x128xf32>,
      %c1 = arith.constant 1 : index
      %c0_18 = arith.constant 0 : index
      %27 = vector.load %arg9[%c1, %c0_18] : memref<2x128xf32, #tpu.memory_space<vmem>>, vector<1x128xf32>
      %28 = arith.mulf %5, %5 : vector<8x128xf32>
      %cst_19 = arith.constant dense<0.000000e+00> : vector<128xf32>
      %29 = vector.multi_reduction <add>, %28, %cst_19 [0] : vector<8x128xf32> to vector<128xf32>
      %30 = vector.shape_cast %29 : vector<128xf32> to vector<1x128xf32>
      %31 = arith.addf %27, %30 : vector<1x128xf32>
      %c1_20 = arith.constant 1 : index
      %c0_21 = arith.constant 0 : index
      %32 = vector.load %arg9[%c1_20, %c0_21] : memref<2x128xf32, #tpu.memory_space<vmem>>, vector<1x128xf32>
      tpu.vector_store %arg9[%c1_20, %c0_21], %31 {strides = array<i32>} : memref<2x128xf32, #tpu.memory_space<vmem>>, vector<1x128xf32>,
    } else {
    }
    %c1_i32 = arith.constant 1 : i32
    %14 = arith.cmpi eq, %arg1, %c1_i32 : i32
    %c0_i32_9 = arith.constant 0 : i32
    %15 = arith.cmpi eq, %arg2, %c0_i32_9 : i32
    %16 = arith.andi %14, %15 : i1
    %17 = arith.extui %16 : i1 to i32
    %c0_i32_10 = arith.constant 0 : i32
    %18 = arith.cmpi ne, %17, %c0_i32_10 : i32
    scf.if %18 {
      %c0_13 = arith.constant 0 : index
      %c0_14 = arith.constant 0 : index
      %22 = vector.load %arg9[%c0_13, %c0_14] : memref<2x128xf32, #tpu.memory_space<vmem>>, vector<1x128xf32>
      %cst_15 = arith.constant 1.250000e-01 : f32
      %23 = vector.broadcast %cst_15 : f32 to vector<1x128xf32>
      %24 = arith.mulf %22, %23 : vector<1x128xf32>
      %c1 = arith.constant 1 : index
      %c0_16 = arith.constant 0 : index
      %25 = vector.load %arg9[%c1, %c0_16] : memref<2x128xf32, #tpu.memory_space<vmem>>, vector<1x128xf32>
      %cst_17 = arith.constant 1.250000e-01 : f32
      %26 = vector.broadcast %cst_17 : f32 to vector<1x128xf32>
      %27 = arith.mulf %25, %26 : vector<1x128xf32>
      %28 = arith.mulf %24, %24 : vector<1x128xf32>
      %29 = arith.subf %27, %28 : vector<1x128xf32>
      %cst_18 = arith.constant 0.000000e+00 : f32
      %30 = vector.broadcast %cst_18 : f32 to vector<1x128xf32>
      %31 = arith.maximumf %29, %30 : vector<1x128xf32>
      %c0_19 = arith.constant 0 : index
      %c0_20 = arith.constant 0 : index
      %32 = vector.load %arg6[%c0_19, %c0_20] : memref<1x128xf32, #tpu.memory_space<vmem>>, vector<1x128xf32>
      %cst_21 = arith.constant 9.99999974E-6 : f32
      %33 = vector.broadcast %cst_21 : f32 to vector<1x128xf32>
      %34 = arith.addf %31, %33 : vector<1x128xf32>
      %35 = math.rsqrt %34 : vector<1x128xf32>
      %36 = arith.mulf %32, %35 : vector<1x128xf32>
      %c0_22 = arith.constant 0 : index
      %c0_23 = arith.constant 0 : index
      %37 = vector.load %arg7[%c0_22, %c0_23] : memref<1x128xf32, #tpu.memory_space<vmem>>, vector<1x128xf32>
      %38 = arith.mulf %24, %36 : vector<1x128xf32>
      %39 = arith.subf %37, %38 : vector<1x128xf32>
      %c0_24 = arith.constant 0 : index
      %c0_25 = arith.constant 0 : index
      %40 = vector.load %arg9[%c0_24, %c0_25] : memref<2x128xf32, #tpu.memory_space<vmem>>, vector<1x128xf32>
      tpu.vector_store %arg9[%c0_24, %c0_25], %36 {strides = array<i32>} : memref<2x128xf32, #tpu.memory_space<vmem>>, vector<1x128xf32>,
      %c1_26 = arith.constant 1 : index
      %c0_27 = arith.constant 0 : index
      %41 = vector.load %arg9[%c1_26, %c0_27] : memref<2x128xf32, #tpu.memory_space<vmem>>, vector<1x128xf32>
      tpu.vector_store %arg9[%c1_26, %c0_27], %39 {strides = array<i32>} : memref<2x128xf32, #tpu.memory_space<vmem>>, vector<1x128xf32>,
    } else {
    }
    %c1_i32_11 = arith.constant 1 : i32
    %19 = arith.cmpi eq, %arg1, %c1_i32_11 : i32
    %20 = arith.extui %19 : i1 to i32
    %c0_i32_12 = arith.constant 0 : i32
    %21 = arith.cmpi ne, %20, %c0_i32_12 : i32
    scf.if %21 {
      %c0_13 = arith.constant 0 : index
      %c0_14 = arith.constant 0 : index
      %22 = vector.load %arg9[%c0_13, %c0_14] : memref<2x128xf32, #tpu.memory_space<vmem>>, vector<1x128xf32>
      %23 = vector.broadcast %22 : vector<1x128xf32> to vector<8x128xf32>
      %24 = arith.mulf %5, %23 : vector<8x128xf32>
      %c1 = arith.constant 1 : index
      %c0_15 = arith.constant 0 : index
      %25 = vector.load %arg9[%c1, %c0_15] : memref<2x128xf32, #tpu.memory_space<vmem>>, vector<1x128xf32>
      %26 = vector.broadcast %25 : vector<1x128xf32> to vector<8x128xf32>
      %27 = arith.addf %24, %26 : vector<8x128xf32>
      %cst_16 = arith.constant 0.000000e+00 : f32
      %28 = vector.broadcast %cst_16 : f32 to vector<8x128xf32>
      %29 = arith.cmpf oge, %27, %28 : vector<8x128xf32>
      %cst_17 = arith.constant 2.000000e-01 : f32
      %30 = vector.broadcast %cst_17 : f32 to vector<8x128xf32>
      %31 = arith.mulf %30, %27 : vector<8x128xf32>
      %32 = arith.select %29, %27, %31 : vector<8x128xi1>, vector<8x128xf32>
      %c0_18 = arith.constant 0 : index
      %c0_19 = arith.constant 0 : index
      %33 = vector.load %arg8[%c0_18, %c0_19] : memref<8x128xf32, #tpu.memory_space<vmem>>, vector<8x128xf32>
      tpu.vector_store %arg8[%c0_18, %c0_19], %32 {strides = array<i32>} : memref<8x128xf32, #tpu.memory_space<vmem>>, vector<8x128xf32>,
    } else {
    }
    return
  }
  func.func @transform_0(%arg0: i32, %arg1: i32, %arg2: i32) -> (i32, i32) {
    %c0_i32 = arith.constant 0 : i32
    %c0_i32_0 = arith.constant 0 : i32
    return %arg2, %c0_i32 : i32, i32
  }
  func.func @transform_1(%arg0: i32, %arg1: i32, %arg2: i32) -> (i32, i32) {
    %c0_i32 = arith.constant 0 : i32
    %c0_i32_0 = arith.constant 0 : i32
    return %arg0, %c0_i32 : i32, i32
  }
  func.func @transform_2(%arg0: i32, %arg1: i32, %arg2: i32) -> (i32, i32) {
    %c0_i32 = arith.constant 0 : i32
    %c0_i32_0 = arith.constant 0 : i32
    return %c0_i32, %arg0 : i32, i32
  }
  func.func @transform_3(%arg0: i32, %arg1: i32, %arg2: i32) -> (i32, i32) {
    %c0_i32 = arith.constant 0 : i32
    %c0_i32_0 = arith.constant 0 : i32
    return %c0_i32, %arg0 : i32, i32
  }
  func.func @transform_4(%arg0: i32, %arg1: i32, %arg2: i32) -> (i32, i32) {
    %c0_i32 = arith.constant 0 : i32
    %c0_i32_0 = arith.constant 0 : i32
    return %c0_i32, %arg0 : i32, i32
  }
  func.func @transform_5(%arg0: i32, %arg1: i32, %arg2: i32) -> (i32, i32) {
    %c0_i32 = arith.constant 0 : i32
    return %arg2, %arg0 : i32, i32
  }
}

</mosaic_0001>

<llo_original>
// kernel: tpu_custom_call.1
$region0: #{tpu_custom_call.1}
  #allocation0 [shape = 'u32[]', space=smem, size = 0x4, offset = 0x4, fixed_abs, tag = 'smem constant byte address 0x4 - core index']
  #allocation1 [shape = 'u32[144,128]{1,0:T(1,128)}', space=vmem, size = 0x12000, scoped, tag = 'internal scratch']
  #allocation2 [shape = 'f32[2,128]{1,0:T(2,128)}', space=vmem, size = 0x400, scoped, tag = 'scratch operand']
  %s0 = inlined_call_operand.vmem [shape: f32[8,32], index: 0, kind: input, shape index: {}]
  %s1 = inlined_call_operand.vmem [shape: f32[128,32], index: 1, kind: input, shape index: {}]
  %s2 = inlined_call_operand.vmem [shape: f32[1,128], index: 2, kind: input, shape index: {}]
  %s3 = inlined_call_operand.vmem [shape: f32[1,128], index: 3, kind: input, shape index: {}]
  %s4 = inlined_call_operand.vmem [shape: f32[1,128], index: 4, kind: input, shape index: {}]
  %s5 = inlined_call_operand.hbm [shape: f32[8,128], index: 5, kind: output, shape index: {}]
  %s6 = sld [smem:[#allocation0]]
  $region69: #{tpu_custom_call.1} parent=0
    _
  %s8 = ssub.s32 1, %s6
  %s9 = scalar_select 0, %s8, %s6
  $region1: #{tpu_custom_call.1} parent=0
    #allocation3 [shape = 'u8[4096]{0}', space=vmem, size = 0x1000, scoped, tag = 'output window, operand 0, single buffered']
    #allocation4 [shape = 's32[2]{0}', space=sflag, size = 0x8, scoped, tag = 'scoped memory for tpu_custom_call.1']
    %10 = vsyncpa [#allocation4], 0
    loop: start=0, step=1, limit=4
    $region2: #{tpu_custom_call.1} parent=1 // loop_pre_header
      _
    $region3: #{tpu_custom_call.1} parent=1 // loop_header
      %s12 = sphi 0, %s16
      %p13 = scmp.ge.s32.totalorder %s12, 4
      %s19 = sphi 0, %s38
      %s20 = sphi 0, %s34
      %s21 = sphi 0, %s30
      %s22 = sphi 0, %s19
      %s23 = sphi 0, %s20
      %s24 = sphi 0, %s21
      %s25 = sphi 0, %s22
      %s26 = sphi 0, %s23
      %s27 = sphi 0, %s24
      %s41 = sphi 0, %s43
      %s44 = sphi 0, %s41
      %s45 = sphi 0, %s44
      %s61 = sphi 0, %s45
      %s67 = sphi 0, %s69
      %s70 = sphi 0, %s67
      %s71 = sphi 0, %s70
      %s87 = sphi 0, %s71
      %s93 = sphi 0, %s95
      %s96 = sphi 0, %s93
      %s97 = sphi 0, %s96
      %s113 = sphi 0, %s97
      %s119 = sphi 0, %s121
      %s122 = sphi 0, %s119
      %s123 = sphi 0, %s122
      %s139 = sphi 0, %s123
      %s145 = sphi 0, %s147
      %s148 = sphi 0, %s145
      %s149 = sphi 0, %s148
      %s165 = sphi 0, %s149
      %s173 = sphi 0, %s175
      %s176 = sphi 0, %s173
      %s177 = sphi 0, %s176
      %s193 = sphi 0, %s177
    $region4: #{tpu_custom_call.1} parent=1 // loop_header_branch
      %15 = sbr.rel (%p13) target = $region8
    $region5: #{tpu_custom_call.1} parent=1 // loop_body
      %s17 = ssub.s32 %s12, 1
      %s18 = ssub.s32 %s12, 2
      %s28 = sadd.s32 1, %s21
      %p29 = scmp.ge.s32.totalorder %s28, 1
      %s30 = scalar_select %p29, 0, %s28
      %s31 = sadd.s32 1, %s20
      %s32 = scalar_select %p29, %s31, %s20
      %p33 = scmp.ge.s32.totalorder %s32, 2
      %s34 = scalar_select %p33, 0, %s32
      %s35 = sadd.s32 1, %s19
      %s36 = scalar_select %p33, %s35, %s19
      %p37 = scmp.ge.s32.totalorder %s36, 1
      %s38 = scalar_select %p37, 0, %s36
      %s39 = ssub.s32 %s21, %s30
      %p40 = scmp.eq.s32.totalorder %s39, 0
      %s42 = sadd.s32 %s41, 1
      %s43 = scalar_select %p40, %s41, %s42
      %p46 = pneg %p40
      %p47 = scmp.eq.s32.totalorder %s12, 1
      %p48 = por %p46, %p47
      %p49 = scmp.ne.s32.totalorder %s41, %s44
      %p50 = scmp.eq.s32.totalorder %s12, 0
      %p51 = por %p49, %p50
      %p52 = scmp.ne.s32.totalorder %s41, %s44
      %p53 = scmp.eq.s32.totalorder %s17, 1
      %p54 = por %p52, %p53
      %p55 = scmp.ne.s32.totalorder %s44, %s45
      %p56 = scmp.eq.s32.totalorder %s17, 0
      %p57 = por %p55, %p56
      %p58 = scmp.ne.s32.totalorder %s44, %s45
      %p59 = scmp.eq.s32.totalorder %s18, 1
      %p60 = por %p58, %p59
      %p62 = scmp.ne.s32.totalorder %s45, %s61
      %p63 = scmp.eq.s32.totalorder %s18, 0
      %p64 = por %p62, %p63
      %s65 = ssub.s32 %s19, %s38
      %p66 = scmp.eq.s32.totalorder %s65, 0
      %s68 = sadd.s32 %s67, 1
      %s69 = scalar_select %p66, %s67, %s68
      %p72 = pneg %p66
      %p73 = scmp.eq.s32.totalorder %s12, 1
      %p74 = por %p72, %p73
      %p75 = scmp.ne.s32.totalorder %s67, %s70
      %p76 = scmp.eq.s32.totalorder %s12, 0
      %p77 = por %p75, %p76
      %p78 = scmp.ne.s32.totalorder %s67, %s70
      %p79 = scmp.eq.s32.totalorder %s17, 1
      %p80 = por %p78, %p79
      %p81 = scmp.ne.s32.totalorder %s70, %s71
      %p82 = scmp.eq.s32.totalorder %s17, 0
      %p83 = por %p81, %p82
      %p84 = scmp.ne.s32.totalorder %s70, %s71
      %p85 = scmp.eq.s32.totalorder %s18, 1
      %p86 = por %p84, %p85
      %p88 = scmp.ne.s32.totalorder %s71, %s87
      %p89 = scmp.eq.s32.totalorder %s18, 0
      %p90 = por %p88, %p89
      %s91 = ssub.s32 %s19, %s38
      %p92 = scmp.eq.s32.totalorder %s91, 0
      %s94 = sadd.s32 %s93, 1
      %s95 = scalar_select %p92, %s93, %s94
      %p98 = pneg %p92
      %p99 = scmp.eq.s32.totalorder %s12, 1
      %p100 = por %p98, %p99
      %p101 = scmp.ne.s32.totalorder %s93, %s96
      %p102 = scmp.eq.s32.totalorder %s12, 0
      %p103 = por %p101, %p102
      %p104 = scmp.ne.s32.totalorder %s93, %s96
      %p105 = scmp.eq.s32.totalorder %s17, 1
      %p106 = por %p104, %p105
      %p107 = scmp.ne.s32.totalorder %s96, %s97
      %p108 = scmp.eq.s32.totalorder %s17, 0
      %p109 = por %p107, %p108
      %p110 = scmp.ne.s32.totalorder %s96, %s97
      %p111 = scmp.eq.s32.totalorder %s18, 1
      %p112 = por %p110, %p111
      %p114 = scmp.ne.s32.totalorder %s97, %s113
      %p115 = scmp.eq.s32.totalorder %s18, 0
      %p116 = por %p114, %p115
      %s117 = ssub.s32 %s19, %s38
      %p118 = scmp.eq.s32.totalorder %s117, 0
      %s120 = sadd.s32 %s119, 1
      %s121 = scalar_select %p118, %s119, %s120
      %p124 = pneg %p118
      %p125 = scmp.eq.s32.totalorder %s12, 1
      %p126 = por %p124, %p125
      %p127 = scmp.ne.s32.totalorder %s119, %s122
      %p128 = scmp.eq.s32.totalorder %s12, 0
      %p129 = por %p127, %p128
      %p130 = scmp.ne.s32.totalorder %s119, %s122
      %p131 = scmp.eq.s32.totalorder %s17, 1
      %p132 = por %p130, %p131
      %p133 = scmp.ne.s32.totalorder %s122, %s123
      %p134 = scmp.eq.s32.totalorder %s17, 0
      %p135 = por %p133, %p134
      %p136 = scmp.ne.s32.totalorder %s122, %s123
      %p137 = scmp.eq.s32.totalorder %s18, 1
      %p138 = por %p136, %p137
      %p140 = scmp.ne.s32.totalorder %s123, %s139
      %p141 = scmp.eq.s32.totalorder %s18, 0
      %p142 = por %p140, %p141
      %s143 = ssub.s32 %s19, %s38
      %p144 = scmp.eq.s32.totalorder %s143, 0
      %s146 = sadd.s32 %s145, 1
      %s147 = scalar_select %p144, %s145, %s146
      %p150 = pneg %p144
      %p151 = scmp.eq.s32.totalorder %s12, 1
      %p152 = por %p150, %p151
      %p153 = scmp.ne.s32.totalorder %s145, %s148
      %p154 = scmp.eq.s32.totalorder %s12, 0
      %p155 = por %p153, %p154
      %p156 = scmp.ne.s32.totalorder %s145, %s148
      %p157 = scmp.eq.s32.totalorder %s17, 1
      %p158 = por %p156, %p157
      %p159 = scmp.ne.s32.totalorder %s148, %s149
      %p160 = scmp.eq.s32.totalorder %s17, 0
      %p161 = por %p159, %p160
      %p162 = scmp.ne.s32.totalorder %s148, %s149
      %p163 = scmp.eq.s32.totalorder %s18, 1
      %p164 = por %p162, %p163
      %p166 = scmp.ne.s32.totalorder %s149, %s165
      %p167 = scmp.eq.s32.totalorder %s18, 0
      %p168 = por %p166, %p167
      %s169 = ssub.s32 %s21, %s30
      %s170 = ssub.s32 %s19, %s38
      %s171 = sor.u32 %s169, %s170
      %p172 = scmp.eq.s32.totalorder %s171, 0
      %s174 = sadd.s32 %s173, 1
      %s175 = scalar_select %p172, %s173, %s174
      %p178 = pneg %p172
      %p179 = scmp.eq.s32.totalorder %s12, 1
      %p180 = por %p178, %p179
      %p181 = scmp.ne.s32.totalorder %s173, %s176
      %p182 = scmp.eq.s32.totalorder %s12, 0
      %p183 = por %p181, %p182
      %p184 = scmp.ne.s32.totalorder %s173, %s176
      %p185 = scmp.eq.s32.totalorder %s17, 1
      %p186 = por %p184, %p185
      %p187 = scmp.ne.s32.totalorder %s176, %s177
      %p188 = scmp.eq.s32.totalorder %s17, 0
      %p189 = por %p187, %p188
      %p190 = scmp.ne.s32.totalorder %s176, %s177
      %p191 = scmp.eq.s32.totalorder %s18, 1
      %p192 = por %p190, %p191
      %p194 = scmp.ne.s32.totalorder %s177, %s193
      %p195 = scmp.eq.s32.totalorder %s18, 0
      %p196 = por %p194, %p195
      %p197 = scmp.le.s32.totalorder 1, %s12
      %p198 = scmp.lt.s32.totalorder %s12, 3
      %p199 = pnand %p197, %p198
      %p200 = pneg %p199
      // Predicated region
      $region9: #{tpu_custom_call.1} parent=5 // pred_check
        _
      $region10: #{tpu_custom_call.1} parent=5 // pred_check_branch
        %202 = sbr.rel (%p199) target = $region12
      $region11: #{tpu_custom_call.1} parent=5 // pred_region
        %s203 = ssub.s32 %s12, 1
        // Predicated region
        $region13: #{tpu_custom_call.1} parent=11 // pred_check
          %p204 = pneg %p57
        $region14: #{tpu_custom_call.1} parent=11 // pred_check_branch
          %206 = sbr.rel (%p204) target = $region16
        $region15: #{tpu_custom_call.1} parent=11 // pred_region
          %p207 = scmp.lt.s32.totalorder %s24, 0
          %s208 = scalar_select %p207, %s24, 0
          %s209 = smul.addr %s208, 8
          %s210 = scalar_lea.vmem %s0, %s209
        $region16: #{tpu_custom_call.1} parent=11 // pred_fallthru
          _
        // Predicated region
        $region17: #{tpu_custom_call.1} parent=11 // pred_check
          %p211 = pneg %p83
        $region18: #{tpu_custom_call.1} parent=11 // pred_check_branch
          %213 = sbr.rel (%p211) target = $region20
        $region19: #{tpu_custom_call.1} parent=11 // pred_region
          %s214 = smul.u32 16, %s22
          %p215 = scmp.lt.s32.totalorder %s214, 15
          %s216 = scalar_select %p215, %s214, 15
          %s217 = smul.addr %s216, 8
          %s218 = scalar_lea.vmem %s1, %s217
          %s219 = smul.u32 16, %s22
        $region20: #{tpu_custom_call.1} parent=11 // pred_fallthru
          _
        // Predicated region
        $region21: #{tpu_custom_call.1} parent=11 // pred_check
          %p220 = pneg %p109
        $region22: #{tpu_custom_call.1} parent=11 // pred_check_branch
          %222 = sbr.rel (%p220) target = $region24
        $region23: #{tpu_custom_call.1} parent=11 // pred_region
          %p223 = scmp.lt.s32.totalorder %s22, 0
          %s224 = scalar_select %p223, %s22, 0
          %s225 = scalar_lea.vmem %s2, %s224
        $region24: #{tpu_custom_call.1} parent=11 // pred_fallthru
          _
        // Predicated region
        $region25: #{tpu_custom_call.1} parent=11 // pred_check
          %p226 = pneg %p135
        $region26: #{tpu_custom_call.1} parent=11 // pred_check_branch
          %228 = sbr.rel (%p226) target = $region28
        $region27: #{tpu_custom_call.1} parent=11 // pred_region
          %p229 = scmp.lt.s32.totalorder %s22, 0
          %s230 = scalar_select %p229, %s22, 0
          %s231 = scalar_lea.vmem %s3, %s230
        $region28: #{tpu_custom_call.1} parent=11 // pred_fallthru
          _
        // Predicated region
        $region29: #{tpu_custom_call.1} parent=11 // pred_check
          %p232 = pneg %p161
        $region30: #{tpu_custom_call.1} parent=11 // pred_check_branch
          %234 = sbr.rel (%p232) target = $region32
        $region31: #{tpu_custom_call.1} parent=11 // pred_region
          %p235 = scmp.lt.s32.totalorder %s22, 0
          %s236 = scalar_select %p235, %s22, 0
          %s237 = scalar_lea.vmem %s4, %s236
        $region32: #{tpu_custom_call.1} parent=11 // pred_fallthru
          _
      $region12: #{tpu_custom_call.1} parent=5 // pred_fallthru
        _
      %p238 = scmp.lt.s32.totalorder %s12, 2
      // Predicated region
      $region33: #{tpu_custom_call.1} parent=5 // pred_check
        %p239 = pneg %p238
      $region34: #{tpu_custom_call.1} parent=5 // pred_check_branch
        %241 = sbr.rel (%p239) target = $region36
      $region35: #{tpu_custom_call.1} parent=5 // pred_region
        _
      $region36: #{tpu_custom_call.1} parent=5 // pred_fallthru
        _
      %p242 = scmp.le.s32.totalorder 1, %s12
      %p243 = scmp.lt.s32.totalorder %s12, 3
      %p244 = pnand %p242, %p243
      %p245 = pneg %p244
      // Predicated region
      $region37: #{tpu_custom_call.1} parent=5 // pred_check
        _
      $region38: #{tpu_custom_call.1} parent=5 // pred_check_branch
        %247 = sbr.rel (%p244) target = $region40
      $region39: #{tpu_custom_call.1} parent=5 // pred_region
        %s248 = ssub.s32 %s12, 1
        %p249 = scmp.lt.s32.totalorder %s24, 0
        %s250 = scalar_select %p249, %s24, 0
        %s251 = smul.addr %s250, 8
        %s252 = scalar_lea.vmem %s0, %s251
        %p253 = pneg %p57
        %p254 = pneg %p54
        %s255 = smul.u32 16, %s22
        %p256 = scmp.lt.s32.totalorder %s255, 15
        %s257 = scalar_select %p256, %s255, 15
        %s258 = smul.addr %s257, 8
        %s259 = scalar_lea.vmem %s1, %s258
        %p260 = pneg %p83
        %p261 = pneg %p80
        %p262 = scmp.lt.s32.totalorder %s22, 0
        %s263 = scalar_select %p262, %s22, 0
        %s264 = scalar_lea.vmem %s2, %s263
        %p265 = pneg %p109
        %p266 = pneg %p106
        %p267 = scmp.lt.s32.totalorder %s22, 0
        %s268 = scalar_select %p267, %s22, 0
        %s269 = scalar_lea.vmem %s3, %s268
        %p270 = pneg %p135
        %p271 = pneg %p132
        %p272 = scmp.lt.s32.totalorder %s22, 0
        %s273 = scalar_select %p272, %s22, 0
        %s274 = scalar_lea.vmem %s4, %s273
        %p275 = pneg %p161
        %p276 = pneg %p158
        %p277 = pneg %p189
        %p278 = pneg %p186
        %p279 = scmp.lt.s32.totalorder %s24, 0
        %s280 = scalar_select %p279, %s24, 0
        %s281 = smul.addr %s280, 8
        %s282 = scalar_lea.vmem %s0, %s281
        %s283 = smul.u32 16, %s22
        %p284 = scmp.lt.s32.totalorder %s283, 15
        %s285 = scalar_select %p284, %s283, 15
        %s286 = smul.addr %s285, 8
        %s287 = scalar_lea.vmem %s1, %s286
        %s288 = smul.u32 16, %s22
        %p289 = scmp.lt.s32.totalorder %s22, 0
        %s290 = scalar_select %p289, %s22, 0
        %s291 = scalar_lea.vmem %s2, %s290
        %p292 = scmp.lt.s32.totalorder %s22, 0
        %s293 = scalar_select %p292, %s22, 0
        %s294 = scalar_lea.vmem %s3, %s293
        %p295 = scmp.lt.s32.totalorder %s22, 0
        %s296 = scalar_select %p295, %s22, 0
        %s297 = scalar_lea.vmem %s4, %s296
        %v298 = vld [vmem:[%s282] sm:$0xff]
        %v299 = vld [vmem:[%s287] sm:$0xff]
        %v300 = vld [vmem:[%s287 + $0x8] sm:$0xff]
        %v301 = vld [vmem:[%s287 + $0x10] sm:$0xff]
        %v302 = vld [vmem:[%s287 + $0x18] sm:$0xff]
        %v303 = vld [vmem:[%s287 + $0x20] sm:$0xff]
        %v304 = vld [vmem:[%s287 + $0x28] sm:$0xff]
        %v305 = vld [vmem:[%s287 + $0x30] sm:$0xff]
        %v306 = vld [vmem:[%s287 + $0x38] sm:$0xff]
        %v307 = vld [vmem:[%s287 + $0x40] sm:$0xff]
        %v308 = vld [vmem:[%s287 + $0x48] sm:$0xff]
        %v309 = vld [vmem:[%s287 + $0x50] sm:$0xff]
        %v310 = vld [vmem:[%s287 + $0x58] sm:$0xff]
        %v311 = vld [vmem:[%s287 + $0x60] sm:$0xff]
        %v312 = vld [vmem:[%s287 + $0x68] sm:$0xff]
        %v313 = vld [vmem:[%s287 + $0x70] sm:$0xff]
        %v314 = vld [vmem:[%s287 + $0x78] sm:$0xff]
        %v315 = vld [vmem:[%s291] sm:$0x1]
        %v317 = vlaneseq
        %v318 = vshrl.u32 %v317, 7
        %v319 = vsub.s32 0, %v318
        %v320 = vrot.slane %v315, %v319
        %vm322 = vcmask 261120
        %v324 = vsel %vm322, %v298, 0
        %v327 = vsel %vm322, %v299, 0
        %v330 = vsel %vm322, %v300, 0
        %v333 = vsel %vm322, %v301, 0
        %v336 = vsel %vm322, %v302, 0
        %v339 = vsel %vm322, %v303, 0
        %v342 = vsel %vm322, %v304, 0
        %v345 = vsel %vm322, %v305, 0
        %v348 = vsel %vm322, %v306, 0
        %v351 = vsel %vm322, %v307, 0
        %v354 = vsel %vm322, %v308, 0
        %v357 = vsel %vm322, %v309, 0
        %v360 = vsel %vm322, %v310, 0
        %v363 = vsel %vm322, %v311, 0
        %v366 = vsel %vm322, %v312, 0
        %v369 = vsel %vm322, %v313, 0
        %v372 = vsel %vm322, %v314, 0
        %374 = vmatprep.subr.mxu0 0.0
        %375 = vmatpush1.xpose.msra.mxu0 %v327
        %376 = vmatprep.subr.mxu0 0.0
        %377 = vmatpush1.xpose.msra.mxu0 %v330
        %378 = vmatprep.subr.mxu0 0.0
        %379 = vmatpush1.xpose.msra.mxu0 %v333
        %380 = vmatprep.subr.mxu0 0.0
        %381 = vmatpush1.xpose.msra.mxu0 %v336
        %382 = vmatprep.subr.mxu0 0.0
        %383 = vmatpush1.xpose.msra.mxu0 %v339
        %384 = vmatprep.subr.mxu0 0.0
        %385 = vmatpush1.xpose.msra.mxu0 %v342
        %386 = vmatprep.subr.mxu0 0.0
        %387 = vmatpush1.xpose.msra.mxu0 %v345
        %388 = vmatprep.subr.mxu0 0.0
        %389 = vmatpush1.xpose.msra.mxu0 %v348
        %390 = vmatprep.subr.mxu0 0.0
        %391 = vmatpush1.xpose.msra.mxu0 %v351
        %392 = vmatprep.subr.mxu0 0.0
        %393 = vmatpush1.xpose.msra.mxu0 %v354
        %394 = vmatprep.subr.mxu0 0.0
        %395 = vmatpush1.xpose.msra.mxu0 %v357
        %396 = vmatprep.subr.mxu0 0.0
        %397 = vmatpush1.xpose.msra.mxu0 %v360
        %398 = vmatprep.subr.mxu0 0.0
        %399 = vmatpush1.xpose.msra.mxu0 %v363
        %400 = vmatprep.subr.mxu0 0.0
        %401 = vmatpush1.xpose.msra.mxu0 %v366
        %402 = vmatprep.subr.mxu0 0.0
        %403 = vmatpush1.xpose.msra.mxu0 %v369
        %404 = vmatprep.subr.mxu0 0.0
        %405 = vmatpush1.xpose.msra.mxu0 %v372
        %406 = vmatprep.subr.mxu0 0.0
        %407 = vmatpush1.xpose.msra.mxu0 0.0
        %408 = vmatprep.subr.mxu0 0.0
        %409 = vmatpush1.xpose.msra.mxu0 0.0
        %410 = vmatprep.subr.mxu0 0.0
        %411 = vmatpush1.xpose.msra.mxu0 0.0
        %412 = vmatprep.subr.mxu0 0.0
        %413 = vmatpush1.xpose.msra.mxu0 0.0
        %414 = vmatprep.subr.mxu0 0.0
        %415 = vmatpush1.xpose.msra.mxu0 0.0
        %416 = vmatprep.subr.mxu0 0.0
        %417 = vmatpush1.xpose.msra.mxu0 0.0
        %418 = vmatprep.subr.mxu0 0.0
        %419 = vmatpush1.xpose.msra.mxu0 0.0
        %420 = vmatprep.subr.mxu0 0.0
        %421 = vmatpush1.xpose.msra.mxu0 0.0
        %422 = vmatprep.subr.mxu0 0.0
        %423 = vmatpush1.xpose.msra.mxu0 0.0
        %424 = vmatprep.subr.mxu0 0.0
        %425 = vmatpush1.xpose.msra.mxu0 0.0
        %426 = vmatprep.subr.mxu0 0.0
        %427 = vmatpush1.xpose.msra.mxu0 0.0
        %428 = vmatprep.subr.mxu0 0.0
        %429 = vmatpush1.xpose.msra.mxu0 0.0
        %430 = vmatprep.subr.mxu0 0.0
        %431 = vmatpush1.xpose.msra.mxu0 0.0
        %432 = vmatprep.subr.mxu0 0.0
        %433 = vmatpush1.xpose.msra.mxu0 0.0
        %434 = vmatprep.subr.mxu0 0.0
        %435 = vmatpush1.xpose.msra.mxu0 0.0
        %436 = vmatprep.subr.mxu0 0.0
        %437 = vmatpush1.xpose.msra.mxu0 0.0
        %438 = vmatprep.mubr.f32.mxu0 0.0
        %439 = vmatmul.mubr.f32.gmra.mrb[0].mxu0 %v324
        %v440 = vpop.f32.mrb[0].mxu0
        %v441 = vadd.f32 %v320, %v440
        %v442 = vpop.f32.mrb[0].mxu0
        %443 = vdwg.mxu0
        %p444 = scmp.eq.s32.totalorder %s23, 0
        %p445 = scmp.eq.s32.totalorder %s24, 0
        %p446 = pnand %p444, %p445
        %p447 = pneg %p446
        // Predicated region
        $region41: #{tpu_custom_call.1} parent=39 // pred_check
          _
        $region42: #{tpu_custom_call.1} parent=39 // pred_check_branch
          %449 = sbr.rel (%p446) target = $region44
        $region43: #{tpu_custom_call.1} parent=39 // pred_region
          %450 = vst [vmem:[#allocation2] sm:$0x3] 0.0
        $region44: #{tpu_custom_call.1} parent=39 // pred_fallthru
          _
        // Predicated region
        $region45: #{tpu_custom_call.1} parent=39 // pred_check
          %p451 = pneg %p444
        $region46: #{tpu_custom_call.1} parent=39 // pred_check_branch
          %453 = sbr.rel (%p451) target = $region48
        $region47: #{tpu_custom_call.1} parent=39 // pred_region
          %v454 = vld [vmem:[#allocation2] sm:$0x1]
          %v455 = vrot.slane %v441, 4
          %v456 = vadd.f32 %v441, %v455
          %v457 = vrot.slane %v456, 2
          %v458 = vadd.f32 %v456, %v457
          %v459 = vrot.slane %v458, 1
          %v460 = vadd.f32 %v458, %v459
          %v461 = vadd.f32 %v454, %v460
          %462 = vst [vmem:[#allocation2] sm:$0x1] %v461
          %v463 = vld [vmem:[#allocation2 + $0x1] sm:$0x1]
          %v464 = vmul.f32 %v441, %v441
          %v465 = vrot.slane %v464, 4
          %v466 = vadd.f32 %v464, %v465
          %v467 = vrot.slane %v466, 2
          %v468 = vadd.f32 %v466, %v467
          %v469 = vrot.slane %v468, 1
          %v470 = vadd.f32 %v468, %v469
          %v471 = vadd.f32 %v463, %v470
          %472 = vst [vmem:[#allocation2 + $0x1] sm:$0x1] %v471
        $region48: #{tpu_custom_call.1} parent=39 // pred_fallthru
          _
        %p473 = scmp.eq.s32.totalorder %s23, 1
        %p474 = pnand %p473, %p445
        %p475 = pneg %p474
        // Predicated region
        $region49: #{tpu_custom_call.1} parent=39 // pred_check
          _
        $region50: #{tpu_custom_call.1} parent=39 // pred_check_branch
          %477 = sbr.rel (%p474) target = $region52
        $region51: #{tpu_custom_call.1} parent=39 // pred_region
          %v478 = vld [vmem:[#allocation2] sm:$0x1]
          %v479 = vmul.f32 %v478, 0.125
          %v480 = vld [vmem:[#allocation2 + $0x1] sm:$0x1]
          %v481 = vmul.f32 %v480, 0.125
          %v482 = vmul.f32 %v479, %v479
          %v483 = vsub.f32 %v481, %v482
          %v484 = vmax.f32 %v483, 0.0
          %v485 = vld [vmem:[%s294] sm:$0x1]
          %v486 = vadd.f32 %v484, 1e-05
          %v487 = vrsqrt.pop %v486
          %v488 = vmul.f32 %v485, %v487
          %v489 = vld [vmem:[%s297] sm:$0x1]
          %v490 = vmul.f32 %v479, %v488
          %v491 = vsub.f32 %v489, %v490
          %492 = vst [vmem:[#allocation2] sm:$0x1] %v488
          %493 = vst [vmem:[#allocation2 + $0x1] sm:$0x1] %v491
        $region52: #{tpu_custom_call.1} parent=39 // pred_fallthru
          _
        // Predicated region
        $region53: #{tpu_custom_call.1} parent=39 // pred_check
          %p494 = pneg %p473
        $region54: #{tpu_custom_call.1} parent=39 // pred_check_branch
          %496 = sbr.rel (%p494) target = $region56
        $region55: #{tpu_custom_call.1} parent=39 // pred_region
          %v497 = vld [vmem:[#allocation2] sm:$0x1]
          %v498 = vlaneseq
          %v499 = vshrl.u32 %v498, 7
          %v500 = vsub.s32 0, %v499
          %v501 = vrot.slane %v497, %v500
          %v502 = vmul.f32 %v441, %v501
          %v503 = vld [vmem:[#allocation2 + $0x1] sm:$0x1]
          %v504 = vlaneseq
          %v505 = vshrl.u32 %v504, 7
          %v506 = vsub.s32 0, %v505
          %v507 = vrot.slane %v503, %v506
          %v508 = vadd.f32 %v502, %v507
          %vm509 = vcmp.ge.f32.partialorder %v508, 0.0
          %v510 = vmul.f32 %v508, 0.2
          %v511 = vsel %vm509, %v508, %v510
          %512 = vst [vmem:[#allocation3] sm:$0xff] %v511
        $region56: #{tpu_custom_call.1} parent=39 // pred_fallthru
          _
        // Predicated region
        $region57: #{tpu_custom_call.1} parent=39 // pred_check
          %p513 = pneg %p186
        $region58: #{tpu_custom_call.1} parent=39 // pred_check_branch
          %515 = sbr.rel (%p513) target = $region60
        $region59: #{tpu_custom_call.1} parent=39 // pred_region
          %s517 = ssub.s32 128, 128
          %518 = vsyncadd [#allocation4], %s517
          %s519 = sadd.s32 %s22, %s24
          %s520 = smul.addr %s519, 128
          %s521 = scalar_lea.hbm %s5, %s520
          %s523 = sshll.u32 [#allocation3], 4
          %s524 = int_to_ptr.vmem [resolvable:$true] %s523
          %526 = dma.vmem_to_hbm [thread:$0]  %s524, 128, %s521, [#allocation4]
        $region60: #{tpu_custom_call.1} parent=39 // pred_fallthru
          _
        // Predicated region
        $region61: #{tpu_custom_call.1} parent=39 // pred_check
          %p527 = pneg %p186
        $region62: #{tpu_custom_call.1} parent=39 // pred_check_branch
          %529 = sbr.rel (%p527) target = $region64
        $region63: #{tpu_custom_call.1} parent=39 // pred_region
          %530 = dma.done [#allocation4], 128
        $region64: #{tpu_custom_call.1} parent=39 // pred_fallthru
          _
      $region40: #{tpu_custom_call.1} parent=5 // pred_fallthru
        _
      %p531 = scmp.le.s32.totalorder 2, %s12
      // Predicated region
      $region65: #{tpu_custom_call.1} parent=5 // pred_check
        %p532 = pneg %p531
      $region66: #{tpu_custom_call.1} parent=5 // pred_check_branch
        %534 = sbr.rel (%p532) target = $region68
      $region67: #{tpu_custom_call.1} parent=5 // pred_region
        %s535 = ssub.s32 %s12, 2
      $region68: #{tpu_custom_call.1} parent=5 // pred_fallthru
        _
    $region6: #{tpu_custom_call.1} parent=1 // loop_footer
      %s16 = sadd.s32 1, %s12
    $region7: #{tpu_custom_call.1} parent=1 // loop_footer_branch
      %11 = sbr.rel target = $region3
    $region8: #{tpu_custom_call.1} parent=1 // loop_exit
      _
    %536 = vsyncpa [#allocation4], 1
    %s537 = scalar_lea.sflag [#allocation4], 1
    %538 = vsyncpa %s537, 1

</llo_original>
